<compile_context>
chip_gen: v7x
topology: tpu7x:2x2x1
jax: 0.10.0
libtpu: 0.0.40
codegen_flags: <defaults>
</compile_context>

<pallas_src>
import functools

import jax
import jax.numpy as jnp
from jax.experimental import pallas as pl
from jax.experimental.pallas import tpu as pltpu


_NEG_SLOPE = 0.01                        # nn.LeakyReLU default negative_slope
_LANES = 512                             # lane width of elementwise blocks (multiple of 128)
_MAX_ROW_TILE = 2048                     # elementwise: up to (2048, 512) f32 = 4 MiB / block
_SOFTMAX_BLOCK_BYTES = 2 * 1024 * 1024   # target input bytes per softmax block
_VMEM_LIMIT = 32 * 1024 * 1024           # scoped-VMEM budget (safe on v5e/v6e/v7x)


def _detect_v7x() -> bool:
    try:
        return "v7" in jax.devices()[0].device_kind.lower()
    except Exception:
        return False


_IS_V7X = _detect_v7x()


def _dim_semantics(grid):
    """Per-axis grid semantics; CORE_PARALLEL actually shards across v7x's 2 TCs."""
    sems = [pltpu.PARALLEL] * len(grid)
    if _IS_V7X and len(grid) and grid[0] >= 2:
        sems[0] = pltpu.CORE_PARALLEL
    return tuple(sems)


# ----------------------------- Pallas kernels ------------------------------ #

def _eltwise_kernel(x_ref, o_ref, *, act: str):
    """One lane-dense (tm, 512) tile of an elementwise activation."""
    x = x_ref[...]
    if act == "relu":
        o_ref[...] = jnp.maximum(x, jnp.zeros_like(x))
    elif act == "leaky_relu":
        o_ref[...] = jnp.where(x >= 0, x, x * jnp.asarray(_NEG_SLOPE, x.dtype))
    elif act == "tanh":
        o_ref[...] = jnp.tanh(x.astype(jnp.float32)).astype(o_ref.dtype)
    elif act == "sigmoid":
        # Stable sigmoid via tanh (EUP); avoids an inf intermediate for very
        # negative x that 1/(1+exp(-x)) would produce.
        xf = x.astype(jnp.float32)
        o_ref[...] = (0.5 * (jnp.tanh(0.5 * xf) + 1.0)).astype(o_ref.dtype)
    else:  # unreachable: dispatcher validates the string
        raise ValueError(act)


def _softmax_dim1_kernel(x_ref, o_ref):
    """Softmax over the channel (sublane) axis of a (bn, C, hw_tile) tile."""
    x = x_ref[...].astype(jnp.float32)               # (bn, C, hw)
    m = jnp.max(x, axis=1, keepdims=True)            # sublane reduce (XLU)
    e = jnp.exp(x - m)                               # EUP
    s = jnp.sum(e, axis=1, keepdims=True)
    inv = pl.reciprocal(s, approx=True)              # EUP slot instead of VPU divide
    o_ref[...] = (e * inv).astype(o_ref.dtype)


# ----------------------------- Wrappers ------------------------------------ #

@functools.partial(jax.jit, static_argnames=("act",))
def _eltwise_forward(x, act):
    shape, dtype = x.shape, x.dtype
    total = x.size
    flat = x.reshape(-1)                             # zero-copy

    # Only pad up to one 512-lane row when needed (never for power-of-2 NCHW).
    pad = (-total) % _LANES
    if pad:
        flat = jnp.concatenate([flat, jnp.zeros((pad,), dtype)])
    rows = (total + pad) // _LANES
    x2d = flat.reshape(rows, _LANES)

    # Largest sublane-aligned row tile that does not exceed the array; the
    # grid uses cdiv and Pallas masks the ragged last block (no tm-multiple
    # padding, no extra HBM passes).
    tm = min(_MAX_ROW_TILE, (rows // 8) * 8) if rows >= 8 else rows
    grid = (pl.cdiv(rows, tm),)

    out = pl.pallas_call(
        functools.partial(_eltwise_kernel, act=act),
        out_shape=jax.ShapeDtypeStruct((rows, _LANES), dtype),
        grid=grid,
        in_specs=[pl.BlockSpec((tm, _LANES), lambda i: (i, 0))],
        out_specs=pl.BlockSpec((tm, _LANES), lambda i: (i, 0)),
        compiler_params=pltpu.CompilerParams(
            dimension_semantics=_dim_semantics(grid),
            vmem_limit_bytes=_VMEM_LIMIT),
    )(x2d)

    if pad:
        return out.reshape(-1)[:total].reshape(shape)
    return out.reshape(shape)


@jax.jit
def _softmax_dim1_forward(x):
    shape, dtype = x.shape, x.dtype
    N, C = shape[0], shape[1]
    HW = 1
    for d in shape[2:]:
        HW *= d
    x3 = x.reshape(N, C, HW)                         # contiguous: zero-copy, no transpose

    itemsize = jnp.dtype(dtype).itemsize
    if HW % 128 == 0:
        # Lane tile: as wide as possible while keeping the block near the
        # target size (always a multiple of 128 -> unmasked stores).
        max_lanes = max(128, (_SOFTMAX_BLOCK_BYTES // max(1, C * itemsize)) // 128 * 128)
        hw_tile = min(HW, max_lanes)
    else:
        hw_tile = HW                                 # full extent is always a legal block dim
    # Batch tile so each block is ~2 MiB (amortizes the ~0.35 us/step overhead).
    bn = max(1, min(N, _SOFTMAX_BLOCK_BYTES // max(1, C * hw_tile * itemsize)))

    grid = (pl.cdiv(N, bn), pl.cdiv(HW, hw_tile))
    out = pl.pallas_call(
        _softmax_dim1_kernel,
        out_shape=jax.ShapeDtypeStruct((N, C, HW), dtype),
        grid=grid,
        in_specs=[pl.BlockSpec((bn, C, hw_tile), lambda i, j: (i, 0, j))],
        out_specs=pl.BlockSpec((bn, C, hw_tile), lambda i, j: (i, 0, j)),
        compiler_params=pltpu.CompilerParams(
            dimension_semantics=_dim_semantics(grid),
            vmem_limit_bytes=_VMEM_LIMIT),
    )(x3)
    return out.reshape(shape)


def str_to_activation_forward(x, activation: str):
    """Forward pass of StrToActivation(activation)(x)."""
    if activation == "identity":
        return x                                     # no kernel launch, no copy
    if activation in ("relu", "leaky_relu", "tanh", "sigmoid"):
        return _eltwise_forward(x, activation)
    if activation == "softmax":
        return _softmax_dim1_forward(x)
    raise Exception(
        f"Unknown activation: {activation}, available: relu, leaky_relu, tanh, "
        f"sigmoid, softmax, identity")


# ----------------------------- Reference (pure JAX) ------------------------ #

def str_to_activation_ref(x, activation: str):
    if activation == "relu":
        return jnp.maximum(x, 0.0)
    if activation == "leaky_relu":
        return jnp.where(x >= 0.0, x, _NEG_SLOPE * x)
    if activation == "tanh":
        return jnp.tanh(x)
    if activation == "sigmoid":
        return jax.nn.sigmoid(x)
    if activation == "softmax":
        return jax.nn.softmax(x, axis=1)
    if activation == "identity":
        return x
    raise Exception(f"Unknown activation: {activation}")


# ----------------------------- Main ---------------------------------------- #

if __name__ == "__main__":
    key = jax.random.PRNGKey(0)
    N, C, H, W = 2, 4, 16, 16
    x = 3.0 * jax.random.normal(key, (N, C, H, W), jnp.float32)

    ok = True
    for act in ("relu", "leaky_relu", "tanh", "sigmoid", "softmax", "identity"):
        out = jax.block_until_ready(str_to_activation_forward(x, act))
        ref = str_to_activation_ref(x, act)
        assert out.shape == x.shape, (act, out.shape)
        if act == "softmax":
            # approx EUP reciprocal in the normalization -> slightly looser bound
            rtol, atol = 5e-3, 1e-4
        else:
            rtol, atol = 1e-3, 1e-5
        if not bool(jnp.allclose(out, ref, rtol=rtol, atol=atol)):
            ok = False
            err = float(jnp.abs(out - ref).max())
            print(f"MISMATCH {act}: max abs err = {err}")

    if ok:
        print("KERNEL_OK")
</pallas_src>

<mosaic_0001>
module attributes {stable_mosaic.version = 11 : i64} {
  func.func @_eltwise_kernel(%arg0: i32, %arg1: memref<4x512xf32, #tpu.memory_space<vmem>>, %arg2: memref<4x512xf32, #tpu.memory_space<vmem>>) attributes {dimension_semantics = [#tpu.dimension_semantics<parallel>], iteration_bounds = array<i64: 1>, scalar_prefetch = 0 : i64, scratch_operands = 0 : i64, tpu.core_type = #tpu.core_type<tc>, window_params = [{transform_indices = @transform_0, window_bounds = array<i64: 4, 512>}, {transform_indices = @transform_1, window_bounds = array<i64: 4, 512>}]} {
    %c0 = arith.constant 0 : index
    %c0_0 = arith.constant 0 : index
    %0 = vector.load %arg1[%c0, %c0_0] : memref<4x512xf32, #tpu.memory_space<vmem>>, vector<4x512xf32>
    %cst = arith.constant 0.000000e+00 : f32
    %1 = vector.broadcast %cst : f32 to vector<4x512xf32>
    %2 = arith.maximumf %0, %1 : vector<4x512xf32>
    %c0_1 = arith.constant 0 : index
    %c0_2 = arith.constant 0 : index
    %3 = vector.load %arg2[%c0_1, %c0_2] : memref<4x512xf32, #tpu.memory_space<vmem>>, vector<4x512xf32>
    tpu.vector_store %arg2[%c0_1, %c0_2], %2 {strides = array<i32>} : memref<4x512xf32, #tpu.memory_space<vmem>>, vector<4x512xf32>,
    return
  }
  func.func @transform_0(%arg0: i32) -> (i32, i32) {
    %c0_i32 = arith.constant 0 : i32
    %c0_i32_0 = arith.constant 0 : i32
    return %arg0, %c0_i32 : i32, i32
  }
  func.func @transform_1(%arg0: i32) -> (i32, i32) {
    %c0_i32 = arith.constant 0 : i32
    %c0_i32_0 = arith.constant 0 : i32
    return %arg0, %c0_i32 : i32, i32
  }
}

</mosaic_0001>

<llo_original>
// kernel: _eltwise_forward.1
$region0: #{_eltwise_forward.1}
  #allocation0 [shape = 'u32[]', space=smem, size = 0x4, offset = 0x4, fixed_abs, tag = 'smem constant byte address 0x4 - core index']
  #allocation1 [shape = 'u32[144,128]{1,0:T(1,128)}', space=vmem, size = 0x12000, scoped, tag = 'internal scratch']
  %s0 = inlined_call_operand.vmem [shape: f32[4,512], index: 0, kind: input, shape index: {}]
  %s1 = inlined_call_operand.vmem [shape: f32[4,512], index: 1, kind: output, shape index: {}]
  %s2 = sld [smem:[#allocation0]]
  $region14: #{_eltwise_forward.1} parent=0
    _
  %s4 = ssub.s32 1, %s2
  %s5 = scalar_select 0, %s4, %s2
  // Predicated region
  $region2: #{_eltwise_forward.1} parent=0 // pred_check
    _
  $region3: #{_eltwise_forward.1} parent=0 // pred_check_branch
    %7 = sbr.rel (0) target = $region5
  $region4: #{_eltwise_forward.1} parent=0 // pred_region
    _
  $region5: #{_eltwise_forward.1} parent=0 // pred_fallthru
    _
  %v8 = vld [vmem:[%s0] sm:$0xff]
  %v9 = vld [vmem:[%s0 + $0x8] sm:$0xff]
  %v10 = vmax.f32 %v8, 0.0
  %v11 = vmax.f32 %v9, 0.0
  %12 = vst [vmem:[%s1] sm:$0xff] %v10
  %13 = vst [vmem:[%s1 + $0x8] sm:$0xff] %v11
  // Predicated region
  $region6: #{_eltwise_forward.1} parent=0 // pred_check
    _
  $region7: #{_eltwise_forward.1} parent=0 // pred_check_branch
    %15 = sbr.rel (0) target = $region9
  $region8: #{_eltwise_forward.1} parent=0 // pred_region
    _
  $region9: #{_eltwise_forward.1} parent=0 // pred_fallthru
    _
  // Predicated region
  $region10: #{_eltwise_forward.1} parent=0 // pred_check
    _
  $region11: #{_eltwise_forward.1} parent=0 // pred_check_branch
    %17 = sbr.rel (0) target = $region13
  $region12: #{_eltwise_forward.1} parent=0 // pred_region
    _
  $region13: #{_eltwise_forward.1} parent=0 // pred_fallthru
    _

</llo_original>
